<compile_context>
chip_gen: v5e
topology: v5e:2x2
jax: 0.10.0
libtpu: 0.0.40
codegen_flags: <defaults>
</compile_context>

<pallas_src>
import math
import functools
from typing import NamedTuple

import jax
import jax.numpy as jnp
from jax.experimental import pallas as pl
from jax.experimental.pallas import tpu as pltpu

_GELU_C0 = math.sqrt(2.0 / math.pi)
_GELU_C1 = _GELU_C0 * 0.044715


def _round_up(x: int, m: int) -> int:
    return (x + m - 1) // m * m


def _sublane(dtype) -> int:
    return {4: 8, 2: 16, 1: 32}.get(jnp.dtype(dtype).itemsize, 8)


def _vmem_budget_bytes() -> int:
    """Generation-aware VMEM budget with headroom for Mosaic internal scratch."""
    try:
        cap = int(pltpu.get_tpu_info().vmem_capacity_bytes)
    except Exception:  # conservative fallback valid on all generations
        cap = 64 * 1024 * 1024
    return int(cap * 0.75)   # v5e/v6e: ~96 MiB, v7x: ~48 MiB


def _vmem_estimate(tm, th, C_pad, isz, wsz, osz, use_scratch):
    est = 2 * tm * C_pad * isz            # x tiles (double-buffered)
    est += 2 * C_pad * th * wsz           # W1 slabs
    est += 2 * th * C_pad * wsz           # W2 slabs
    est += 2 * (th + C_pad) * wsz         # bias slabs
    est += 2 * tm * C_pad * osz           # output tiles
    if use_scratch:
        est += tm * C_pad * 4             # f32 accumulator
    est += 2 * tm * th * 4                # h / GELU intermediates (headroom)
    return est


# ----------------------------------------------------------------------------
# Kernels
# ----------------------------------------------------------------------------

def _gelu_slab(x_ref, w1_ref, b1_ref, gelu_bf16):
    # First matmul: native-dtype operands, f32 accumulation on the MXU.
    h = jnp.dot(x_ref[...], w1_ref[...], preferred_element_type=jnp.float32)
    h = h + b1_ref[...].astype(jnp.float32)
    if gelu_bf16:
        # bf16 VPU/EUP path (v6e/v7x): halves vreg traffic on the elementwise
        # phase and removes the separate f32->bf16 cast before the 2nd matmul.
        h = h.astype(jnp.bfloat16)
    # tanh-approximate GELU, polynomial refactored to save one vmul/elem.
    u = h * (_GELU_C0 + _GELU_C1 * (h * h))
    return 0.5 * h * (1.0 + jnp.tanh(u))


def _mlp_kernel_inplace(x_ref, w1_ref, b1_ref, w2_ref, b2_ref, o_ref, *,
                        gelu_bf16):
    """f32 output: accumulate directly into the resident output block."""
    j = pl.program_id(1)

    @pl.when(j == 0)
    def _():
        o_ref[...] = jnp.broadcast_to(b2_ref[...].astype(o_ref.dtype),
                                      o_ref.shape)

    g = _gelu_slab(x_ref, w1_ref, b1_ref, gelu_bf16)
    o_ref[...] += jnp.dot(g.astype(w2_ref.dtype), w2_ref[...],
                          preferred_element_type=jnp.float32)


def _mlp_kernel_scratch(x_ref, w1_ref, b1_ref, w2_ref, b2_ref, o_ref, acc_ref,
                        *, gelu_bf16):
    """Non-f32 output: f32 scratch accumulator, cast once in the epilogue."""
    j = pl.program_id(1)

    @pl.when(j == 0)
    def _():
        acc_ref[...] = jnp.broadcast_to(b2_ref[...].astype(jnp.float32),
                                        acc_ref.shape)

    g = _gelu_slab(x_ref, w1_ref, b1_ref, gelu_bf16)
    acc_ref[...] += jnp.dot(g.astype(w2_ref.dtype), w2_ref[...],
                            preferred_element_type=jnp.float32)

    @pl.when(j == pl.num_programs(1) - 1)
    def _():
        o_ref[...] = acc_ref[...].astype(o_ref.dtype)


# ----------------------------------------------------------------------------
# Weight preparation (done ONCE, outside the per-call forward)
# ----------------------------------------------------------------------------

class MlpParams(NamedTuple):
    w1_slabs: jax.Array   # (H_pad // th, C_pad, th)  — slab-contiguous W1^T
    b1: jax.Array         # (1, H_pad)
    w2: jax.Array         # (H_pad, C_pad)            — W2^T
    b2: jax.Array         # (1, C_pad)


def prepare_mlp_params(w1_t, b1, w2_t, b2, *, th=512) -> MlpParams:
    """Pad to (8,128)/lane-dense alignment and lay W1^T out slab-contiguously.

    w1_t: (C, H) = W1^T,  b1: (H,),  w2_t: (H, C) = W2^T,  b2: (C,).
    """
    C, H = w1_t.shape
    # th: multiple of 256 on v6e/v7x-friendly sizes, 128 minimum for small H.
    align_h = 256 if H >= 256 else 128
    th = max(128, min(_round_up(th, 128), _round_up(H, align_h)))
    C_pad = _round_up(C, 128)            # lane-dense output block
    H_pad = _round_up(H, th)

    # Zero padding is exact: padded hidden cols give gelu(0)=0 and matching
    # zero W2 rows contribute nothing; padded C cols/rows are sliced off.
    w1p = w1_t if (C == C_pad and H == H_pad) else \
        jnp.pad(w1_t, ((0, C_pad - C), (0, H_pad - H)))
    w2p = w2_t if (H == H_pad and C == C_pad) else \
        jnp.pad(w2_t, ((0, H_pad - H), (0, C_pad - C)))
    b1p = (b1 if H == H_pad else jnp.pad(b1, (0, H_pad - H))).reshape(1, H_pad)
    b2p = (b2 if C == C_pad else jnp.pad(b2, (0, C_pad - C))).reshape(1, C_pad)

    # Slab-contiguous W1^T: per-j block (C_pad, th) becomes one contiguous
    # (1, C_pad, th) chunk -> single contiguous DMA per hidden step.
    n_th = H_pad // th
    w1s = w1p.reshape(C_pad, n_th, th).transpose(1, 0, 2)
    return MlpParams(w1s, b1p, w2p, b2p)


# ----------------------------------------------------------------------------
# Forward
# ----------------------------------------------------------------------------

@functools.partial(jax.jit, static_argnames=("tm", "vmem_limit", "gelu_bf16"))
def _mlp_forward_impl(x, w1s, b1p, w2p, b2p, *, tm, vmem_limit, gelu_bf16):
    B, T, C = x.shape
    M = B * T
    n_th, C_pad, th = w1s.shape

    M_pad = _round_up(M, tm)
    x2 = x.reshape(M, C)
    if C != C_pad or M != M_pad:
        x2 = jnp.pad(x2, ((0, M_pad - M), (0, C_pad - C)))

    out_dtype = x.dtype
    use_scratch = out_dtype != jnp.float32
    kernel = functools.partial(
        _mlp_kernel_scratch if use_scratch else _mlp_kernel_inplace,
        gelu_bf16=gelu_bf16)
    scratch = [pltpu.VMEM((tm, C_pad), jnp.float32)] if use_scratch else []

    # NOTE: if profiling shows exposed weight DMA at i-boundaries, add
    # pipeline_mode=pl.Buffered(3) to the two weight BlockSpecs below.
    out2 = pl.pallas_call(
        kernel,
        out_shape=jax.ShapeDtypeStruct((M_pad, C_pad), out_dtype),
        grid_spec=pltpu.PrefetchScalarGridSpec(
            num_scalar_prefetch=0,
            grid=(M_pad // tm, n_th),
            in_specs=[
                pl.BlockSpec((tm, C_pad), lambda i, j: (i, 0)),        # x tile
                pl.BlockSpec((None, C_pad, th), lambda i, j: (j, 0, 0)),  # W1 slab
                pl.BlockSpec((1, th), lambda i, j: (0, j)),             # b1 slab
                pl.BlockSpec((th, C_pad), lambda i, j: (j, 0)),         # W2 slab
                pl.BlockSpec((1, C_pad), lambda i, j: (0, 0)),          # b2
            ],
            out_specs=pl.BlockSpec((tm, C_pad), lambda i, j: (i, 0)),
            scratch_shapes=scratch,
        ),
        compiler_params=pltpu.CompilerParams(
            dimension_semantics=("parallel", "arbitrary"),
            vmem_limit_bytes=vmem_limit,
        ),
    )(x2, w1s, b1p, w2p, b2p)

    if C != C_pad or M != M_pad:
        out2 = out2[:M, :C]
    return out2.reshape(B, T, C)


def mlp_forward(x, params: MlpParams, *, tm=1024):
    """x: (B, T, C); params from prepare_mlp_params."""
    B, T, C = x.shape
    M = B * T
    n_th, C_pad, th = params.w1_slabs.shape

    isz = jnp.dtype(x.dtype).itemsize
    wsz = jnp.dtype(params.w2.dtype).itemsize
    use_scratch = x.dtype != jnp.float32
    sub = _sublane(x.dtype)              # 8 f32 / 16 bf16 / 32 int8-fp8
    budget = _vmem_budget_bytes()

    # Pick the largest tm that fits the generation-aware VMEM budget.
    tm_cap = _round_up(M, sub)
    tm_sel = min(_round_up(max(tm, sub), sub), tm_cap)
    while tm_sel > sub and _vmem_estimate(tm_sel, th, C_pad, isz, wsz, isz,
                                          use_scratch) > budget:
        tm_sel = max(sub, _round_up(tm_sel // 2, sub))
    # Megacore (v7x): keep >= 2 token tiles on the "parallel" axis if M allows.
    if tm_sel >= tm_cap and tm_cap >= 2 * sub:
        tm_sel = _round_up((tm_cap + 1) // 2, sub)

    est = _vmem_estimate(tm_sel, th, C_pad, isz, wsz, isz, use_scratch)
    vmem_limit = int(min(budget, max(2 * est, 32 * 1024 * 1024)))

    gelu_bf16 = jnp.dtype(x.dtype) == jnp.bfloat16
    return _mlp_forward_impl(x, *params, tm=tm_sel, vmem_limit=vmem_limit,
                             gelu_bf16=gelu_bf16)


def mlp_pallas(x, w1_t, b1, w2_t, b2, *, tm=1024, th=512):
    """Convenience wrapper (re-prepares weights each call).

    For hot paths call prepare_mlp_params() once and reuse mlp_forward().
    """
    return mlp_forward(x, prepare_mlp_params(w1_t, b1, w2_t, b2, th=th), tm=tm)


# ----------------------------------------------------------------------------
# Reference & self-test
# ----------------------------------------------------------------------------

def mlp_reference(x, w1_t, b1, w2_t, b2):
    xf = x.astype(jnp.float32)
    h = jnp.dot(xf, w1_t.astype(jnp.float32),
                precision=jax.lax.Precision.HIGHEST) + b1.astype(jnp.float32)
    h = 0.5 * h * (1.0 + jnp.tanh(h * (_GELU_C0 + _GELU_C1 * h * h)))
    y = jnp.dot(h, w2_t.astype(jnp.float32),
                precision=jax.lax.Precision.HIGHEST) + b2.astype(jnp.float32)
    return y.astype(x.dtype)


def _make_params(key, C, H, dtype):
    kw1, kb1, kw2, kb2 = jax.random.split(key, 4)
    lim1 = 1.0 / math.sqrt(C)
    lim2 = 1.0 / math.sqrt(H)
    # Stored pre-transposed: (in_features, out_features)
    w1_t = jax.random.uniform(kw1, (C, H), minval=-lim1, maxval=lim1, dtype=dtype)
    b1 = jax.random.uniform(kb1, (H,), minval=-lim1, maxval=lim1, dtype=dtype)
    w2_t = jax.random.uniform(kw2, (H, C), minval=-lim2, maxval=lim2, dtype=dtype)
    b2 = jax.random.uniform(kb2, (C,), minval=-lim2, maxval=lim2, dtype=dtype)
    return w1_t, b1, w2_t, b2


if __name__ == "__main__":
    key = jax.random.PRNGKey(0)
    k0, k1, k2, k3, k4, k5 = jax.random.split(key, 6)

    # --- 1) Small shapes consistent with the module: batch=2, seq=8, n_embed=32.
    B, T, C = 2, 8, 32
    H = 4 * C
    x = jax.random.normal(k0, (B, T, C), dtype=jnp.float32)
    w1_t, b1, w2_t, b2 = _make_params(k1, C, H, jnp.float32)
    params = prepare_mlp_params(w1_t, b1, w2_t, b2)      # prepared once
    out = jax.block_until_ready(mlp_forward(x, params))
    ref = mlp_reference(x, w1_t, b1, w2_t, b2)
    assert out.shape == (B, T, C)
    assert jnp.allclose(out, ref, atol=5e-3, rtol=5e-3), "mismatch (small f32)"

    # --- 2) Exercise the hidden-dim reduction grid and the 2-tile parallel axis.
    B2, T2, C2 = 2, 128, 256
    H2 = 4 * C2
    x2 = jax.random.normal(k2, (B2, T2, C2), dtype=jnp.float32)
    p2 = _make_params(k3, C2, H2, jnp.float32)
    out2 = jax.block_until_ready(mlp_pallas(x2, *p2))
    ref2 = mlp_reference(x2, *p2)
    assert out2.shape == (B2, T2, C2)
    assert jnp.allclose(out2, ref2, atol=5e-3, rtol=5e-3), "mismatch (tiled f32)"

    # --- 3) bf16 path (f32 scratch accumulator + bf16 GELU elementwise).
    B3, T3, C3 = 2, 64, 128
    H3 = 4 * C3
    x3 = jax.random.normal(k4, (B3, T3, C3), dtype=jnp.bfloat16)
    p3 = _make_params(k5, C3, H3, jnp.bfloat16)
    out3 = jax.block_until_ready(mlp_pallas(x3, *p3))
    ref3 = mlp_reference(x3, *p3)
    assert out3.shape == (B3, T3, C3)
    assert jnp.allclose(out3.astype(jnp.float32), ref3.astype(jnp.float32),
                        atol=0.08, rtol=0.08), "mismatch (bf16)"

    print("KERNEL_OK")
</pallas_src>

<mosaic_0001>
module attributes {stable_mosaic.version = 11 : i64} {
  func.func @_mlp_kernel_inplace(%arg0: i32, %arg1: i32, %arg2: memref<8x128xf32, #tpu.memory_space<vmem>>, %arg3: memref<1x128x128xf32, #tpu.memory_space<vmem>>, %arg4: memref<1x128xf32, #tpu.memory_space<vmem>>, %arg5: memref<128x128xf32, #tpu.memory_space<vmem>>, %arg6: memref<1x128xf32, #tpu.memory_space<vmem>>, %arg7: memref<8x128xf32, #tpu.memory_space<vmem>>) attributes {dimension_semantics = [#tpu.dimension_semantics<parallel>, #tpu.dimension_semantics<arbitrary>], iteration_bounds = array<i64: 2, 1>, scalar_prefetch = 0 : i64, scratch_operands = 0 : i64, tpu.core_type = #tpu.core_type<tc>, window_params = [{transform_indices = @transform_0, window_bounds = array<i64: 8, 128>}, {transform_indices = @transform_1, window_bounds = array<i64: 1, 128, 128>}, {transform_indices = @transform_2, window_bounds = array<i64: 1, 128>}, {transform_indices = @transform_3, window_bounds = array<i64: 128, 128>}, {pipeline_mode = #tpu.pipeline_mode<synchronous>, transform_indices = @transform_4, window_bounds = array<i64: 1, 128>}, {transform_indices = @transform_5, window_bounds = array<i64: 8, 128>}]} {
    %c0_i32 = arith.constant 0 : i32
    %0 = arith.cmpi eq, %arg1, %c0_i32 : i32
    %1 = arith.extui %0 : i1 to i32
    %c0_i32_0 = arith.constant 0 : i32
    %2 = arith.cmpi ne, %1, %c0_i32_0 : i32
    scf.if %2 {
      %c0_18 = arith.constant 0 : index
      %c0_19 = arith.constant 0 : index
      %27 = vector.load %arg6[%c0_18, %c0_19] : memref<1x128xf32, #tpu.memory_space<vmem>>, vector<1x128xf32>
      %28 = vector.shape_cast %27 : vector<1x128xf32> to vector<1x128xf32>
      %29 = vector.broadcast %28 : vector<1x128xf32> to vector<8x128xf32>
      %c0_20 = arith.constant 0 : index
      %c0_21 = arith.constant 0 : index
      %30 = vector.load %arg7[%c0_20, %c0_21] : memref<8x128xf32, #tpu.memory_space<vmem>>, vector<8x128xf32>
      tpu.vector_store %arg7[%c0_20, %c0_21], %29 {strides = array<i32>} : memref<8x128xf32, #tpu.memory_space<vmem>>, vector<8x128xf32>,
    } else {
    }
    %c0 = arith.constant 0 : index
    %c0_1 = arith.constant 0 : index
    %3 = vector.load %arg2[%c0, %c0_1] : memref<8x128xf32, #tpu.memory_space<vmem>>, vector<8x128xf32>
    %c0_2 = arith.constant 0 : index
    %c0_3 = arith.constant 0 : index
    %c0_4 = arith.constant 0 : index
    %4 = vector.load %arg3[%c0_2, %c0_3, %c0_4] : memref<1x128x128xf32, #tpu.memory_space<vmem>>, vector<1x128x128xf32>
    %5 = vector.shape_cast %4 : vector<1x128x128xf32> to vector<128x128xf32>
    %cst = arith.constant dense<0.000000e+00> : vector<8x128xf32>
    %6 = tpu.matmul %3, %5, %cst {dimension_numbers = #tpu.dot_dimension_numbers<[1], [0], [0], [1], [0, 0, 1, 1], [], []>} : vector<8x128xf32>, vector<128x128xf32>, vector<8x128xf32> -> vector<8x128xf32>
    %c0_5 = arith.constant 0 : index
    %c0_6 = arith.constant 0 : index
    %7 = vector.load %arg4[%c0_5, %c0_6] : memref<1x128xf32, #tpu.memory_space<vmem>>, vector<1x128xf32>
    %8 = vector.broadcast %7 : vector<1x128xf32> to vector<8x128xf32>
    %9 = arith.addf %6, %8 : vector<8x128xf32>
    %10 = arith.mulf %9, %9 : vector<8x128xf32>
    %cst_7 = arith.constant 0.0356774069 : f32
    %11 = vector.broadcast %cst_7 : f32 to vector<8x128xf32>
    %12 = arith.mulf %11, %10 : vector<8x128xf32>
    %cst_8 = arith.constant 0.797884583 : f32
    %13 = vector.broadcast %cst_8 : f32 to vector<8x128xf32>
    %14 = arith.addf %13, %12 : vector<8x128xf32>
    %15 = arith.mulf %9, %14 : vector<8x128xf32>
    %cst_9 = arith.constant 5.000000e-01 : f32
    %16 = vector.broadcast %cst_9 : f32 to vector<8x128xf32>
    %17 = arith.mulf %16, %9 : vector<8x128xf32>
    %18 = math.tanh %15 : vector<8x128xf32>
    %cst_10 = arith.constant 1.000000e+00 : f32
    %19 = vector.broadcast %cst_10 : f32 to vector<8x128xf32>
    %20 = arith.addf %19, %18 : vector<8x128xf32>
    %21 = arith.mulf %17, %20 : vector<8x128xf32>
    %c0_11 = arith.constant 0 : index
    %c0_12 = arith.constant 0 : index
    %22 = vector.load %arg7[%c0_11, %c0_12] : memref<8x128xf32, #tpu.memory_space<vmem>>, vector<8x128xf32>
    %c0_13 = arith.constant 0 : index
    %c0_14 = arith.constant 0 : index
    %23 = vector.load %arg5[%c0_13, %c0_14] : memref<128x128xf32, #tpu.memory_space<vmem>>, vector<128x128xf32>
    %cst_15 = arith.constant dense<0.000000e+00> : vector<8x128xf32>
    %24 = tpu.matmul %21, %23, %cst_15 {dimension_numbers = #tpu.dot_dimension_numbers<[1], [0], [0], [1], [0, 0, 1, 1], [], []>} : vector<8x128xf32>, vector<128x128xf32>, vector<8x128xf32> -> vector<8x128xf32>
    %25 = arith.addf %22, %24 : vector<8x128xf32>
    %c0_16 = arith.constant 0 : index
    %c0_17 = arith.constant 0 : index
    %26 = vector.load %arg7[%c0_16, %c0_17] : memref<8x128xf32, #tpu.memory_space<vmem>>, vector<8x128xf32>
    tpu.vector_store %arg7[%c0_16, %c0_17], %25 {strides = array<i32>} : memref<8x128xf32, #tpu.memory_space<vmem>>, vector<8x128xf32>,
    return
  }
  func.func @transform_0(%arg0: i32, %arg1: i32) -> (i32, i32) {
    %c0_i32 = arith.constant 0 : i32
    %c0_i32_0 = arith.constant 0 : i32
    return %arg0, %c0_i32 : i32, i32
  }
  func.func @transform_1(%arg0: i32, %arg1: i32) -> (i32, i32, i32) {
    %c0_i32 = arith.constant 0 : i32
    %c0_i32_0 = arith.constant 0 : i32
    %c0_i32_1 = arith.constant 0 : i32
    return %arg1, %c0_i32, %c0_i32_0 : i32, i32, i32
  }
  func.func @transform_2(%arg0: i32, %arg1: i32) -> (i32, i32) {
    %c0_i32 = arith.constant 0 : i32
    %c0_i32_0 = arith.constant 0 : i32
    return %c0_i32, %arg1 : i32, i32
  }
  func.func @transform_3(%arg0: i32, %arg1: i32) -> (i32, i32) {
    %c0_i32 = arith.constant 0 : i32
    %c0_i32_0 = arith.constant 0 : i32
    return %arg1, %c0_i32 : i32, i32
  }
  func.func @transform_4(%arg0: i32, %arg1: i32) -> (i32, i32) {
    %c0_i32 = arith.constant 0 : i32
    %c0_i32_0 = arith.constant 0 : i32
    %c0_i32_1 = arith.constant 0 : i32
    return %c0_i32, %c0_i32_0 : i32, i32
  }
  func.func @transform_5(%arg0: i32, %arg1: i32) -> (i32, i32) {
    %c0_i32 = arith.constant 0 : i32
    %c0_i32_0 = arith.constant 0 : i32
    return %arg0, %c0_i32 : i32, i32
  }
}

</mosaic_0001>

<llo_original>
// kernel: _mlp_forward_impl.1
$region0: #{_mlp_forward_impl.1}
  #allocation0 [shape = 'u32[]', space=smem, size = 0x4, offset = 0x4, fixed_abs, tag = 'smem constant byte address 0x4 - core index']
  #allocation1 [shape = 'u32[72,128]{1,0:T(1,128)}', space=vmem, size = 0x9000, scoped, tag = 'internal scratch']
  %s0 = inlined_call_operand.vmem [shape: f32[16,128], index: 0, kind: input, shape index: {}]
  %s1 = inlined_call_operand.hbm [shape: f32[1,128,128], index: 1, kind: input, shape index: {}]
  %s2 = inlined_call_operand.vmem [shape: f32[1,128], index: 2, kind: input, shape index: {}]
  %s3 = inlined_call_operand.hbm [shape: f32[128,128], index: 3, kind: input, shape index: {}]
  %s4 = inlined_call_operand.vmem [shape: f32[1,128], index: 4, kind: input, shape index: {}]
  %s5 = inlined_call_operand.vmem [shape: f32[16,128], index: 5, kind: output, shape index: {}]
  %s6 = sld [smem:[#allocation0]]
  $region65: #{_mlp_forward_impl.1} parent=0
    _
  %s8 = ssub.s32 1, %s6
  %s9 = scalar_select 0, %s8, %s6
  $region1: #{_mlp_forward_impl.1} parent=0
    #allocation2 [shape = 'u8[65536]{0}', space=vmem, size = 0x10000, scoped, tag = 'input window, operand 1, single buffered']
    #allocation3 [shape = 's32[2]{0}', space=sflag, size = 0x8, scoped, tag = 'scoped memory for _mlp_forward_impl.1']
    #allocation4 [shape = 'u8[65536]{0}', space=vmem, size = 0x10000, scoped, tag = 'input window, operand 3, single buffered']
    #allocation5 [shape = 's32[1]{0}', space=sflag, size = 0x4, scoped, tag = 'scoped memory for _mlp_forward_impl.1']
    %10 = vsyncpa [#allocation3], 0
    %11 = vsyncpa [#allocation5], 0
    loop: start=0, step=1, limit=4
    $region2: #{_mlp_forward_impl.1} parent=1 // loop_pre_header
      _
    $region3: #{_mlp_forward_impl.1} parent=1 // loop_header
      %s13 = sphi 0, %s17
      %p14 = scmp.ge.s32.totalorder %s13, 4
      %s20 = sphi 0, %s32
      %s21 = sphi 0, %s28
      %s22 = sphi 0, %s20
      %s23 = sphi 0, %s21
      %s24 = sphi 0, %s22
      %s25 = sphi 0, %s23
      %s35 = sphi 0, %s37
      %s38 = sphi 0, %s35
      %s39 = sphi 0, %s38
      %s55 = sphi 0, %s39
      %s61 = sphi 0, %s63
      %s64 = sphi 0, %s61
      %s65 = sphi 0, %s64
      %s81 = sphi 0, %s65
      %s87 = sphi 0, %s89
      %s90 = sphi 0, %s87
      %s91 = sphi 0, %s90
      %s107 = sphi 0, %s91
      %s113 = sphi 0, %s115
      %s116 = sphi 0, %s113
      %s117 = sphi 0, %s116
      %s133 = sphi 0, %s117
      %s137 = sphi 0, %s137
      %s139 = sphi 0, %s137
      %s140 = sphi 0, %s139
      %s154 = sphi 0, %s140
      %s160 = sphi 0, %s162
      %s163 = sphi 0, %s160
      %s164 = sphi 0, %s163
      %s180 = sphi 0, %s164
    $region4: #{_mlp_forward_impl.1} parent=1 // loop_header_branch
      %16 = sbr.rel (%p14) target = $region8
    $region5: #{_mlp_forward_impl.1} parent=1 // loop_body
      %s18 = ssub.s32 %s13, 1
      %s19 = ssub.s32 %s13, 2
      %s26 = sadd.s32 1, %s21
      %p27 = scmp.ge.s32.totalorder %s26, 1
      %s28 = scalar_select %p27, 0, %s26
      %s29 = sadd.s32 1, %s20
      %s30 = scalar_select %p27, %s29, %s20
      %p31 = scmp.ge.s32.totalorder %s30, 2
      %s32 = scalar_select %p31, 0, %s30
      %s33 = ssub.s32 %s20, %s32
      %p34 = scmp.eq.s32.totalorder %s33, 0
      %s36 = sadd.s32 %s35, 1
      %s37 = scalar_select %p34, %s35, %s36
      %p40 = pneg %p34
      %p41 = scmp.eq.s32.totalorder %s13, 1
      %p42 = por %p40, %p41
      %p43 = scmp.ne.s32.totalorder %s35, %s38
      %p44 = scmp.eq.s32.totalorder %s13, 0
      %p45 = por %p43, %p44
      %p46 = scmp.ne.s32.totalorder %s35, %s38
      %p47 = scmp.eq.s32.totalorder %s18, 1
      %p48 = por %p46, %p47
      %p49 = scmp.ne.s32.totalorder %s38, %s39
      %p50 = scmp.eq.s32.totalorder %s18, 0
      %p51 = por %p49, %p50
      %p52 = scmp.ne.s32.totalorder %s38, %s39
      %p53 = scmp.eq.s32.totalorder %s19, 1
      %p54 = por %p52, %p53
      %p56 = scmp.ne.s32.totalorder %s39, %s55
      %p57 = scmp.eq.s32.totalorder %s19, 0
      %p58 = por %p56, %p57
      %s59 = ssub.s32 %s21, %s28
      %p60 = scmp.eq.s32.totalorder %s59, 0
      %s62 = sadd.s32 %s61, 1
      %s63 = scalar_select %p60, %s61, %s62
      %p66 = pneg %p60
      %p67 = scmp.eq.s32.totalorder %s13, 1
      %p68 = por %p66, %p67
      %p69 = scmp.ne.s32.totalorder %s61, %s64
      %p70 = scmp.eq.s32.totalorder %s13, 0
      %p71 = por %p69, %p70
      %p72 = scmp.ne.s32.totalorder %s61, %s64
      %p73 = scmp.eq.s32.totalorder %s18, 1
      %p74 = por %p72, %p73
      %p75 = scmp.ne.s32.totalorder %s64, %s65
      %p76 = scmp.eq.s32.totalorder %s18, 0
      %p77 = por %p75, %p76
      %p78 = scmp.ne.s32.totalorder %s64, %s65
      %p79 = scmp.eq.s32.totalorder %s19, 1
      %p80 = por %p78, %p79
      %p82 = scmp.ne.s32.totalorder %s65, %s81
      %p83 = scmp.eq.s32.totalorder %s19, 0
      %p84 = por %p82, %p83
      %s85 = ssub.s32 %s21, %s28
      %p86 = scmp.eq.s32.totalorder %s85, 0
      %s88 = sadd.s32 %s87, 1
      %s89 = scalar_select %p86, %s87, %s88
      %p92 = pneg %p86
      %p93 = scmp.eq.s32.totalorder %s13, 1
      %p94 = por %p92, %p93
      %p95 = scmp.ne.s32.totalorder %s87, %s90
      %p96 = scmp.eq.s32.totalorder %s13, 0
      %p97 = por %p95, %p96
      %p98 = scmp.ne.s32.totalorder %s87, %s90
      %p99 = scmp.eq.s32.totalorder %s18, 1
      %p100 = por %p98, %p99
      %p101 = scmp.ne.s32.totalorder %s90, %s91
      %p102 = scmp.eq.s32.totalorder %s18, 0
      %p103 = por %p101, %p102
      %p104 = scmp.ne.s32.totalorder %s90, %s91
      %p105 = scmp.eq.s32.totalorder %s19, 1
      %p106 = por %p104, %p105
      %p108 = scmp.ne.s32.totalorder %s91, %s107
      %p109 = scmp.eq.s32.totalorder %s19, 0
      %p110 = por %p108, %p109
      %s111 = ssub.s32 %s21, %s28
      %p112 = scmp.eq.s32.totalorder %s111, 0
      %s114 = sadd.s32 %s113, 1
      %s115 = scalar_select %p112, %s113, %s114
      %p118 = pneg %p112
      %p119 = scmp.eq.s32.totalorder %s13, 1
      %p120 = por %p118, %p119
      %p121 = scmp.ne.s32.totalorder %s113, %s116
      %p122 = scmp.eq.s32.totalorder %s13, 0
      %p123 = por %p121, %p122
      %p124 = scmp.ne.s32.totalorder %s113, %s116
      %p125 = scmp.eq.s32.totalorder %s18, 1
      %p126 = por %p124, %p125
      %p127 = scmp.ne.s32.totalorder %s116, %s117
      %p128 = scmp.eq.s32.totalorder %s18, 0
      %p129 = por %p127, %p128
      %p130 = scmp.ne.s32.totalorder %s116, %s117
      %p131 = scmp.eq.s32.totalorder %s19, 1
      %p132 = por %p130, %p131
      %p134 = scmp.ne.s32.totalorder %s117, %s133
      %p135 = scmp.eq.s32.totalorder %s19, 0
      %p136 = por %p134, %p135
      %s138 = sadd.s32 %s137, 1
      %p141 = scmp.eq.s32.totalorder %s13, 1
      %p142 = scmp.ne.s32.totalorder %s137, %s139
      %p143 = scmp.eq.s32.totalorder %s13, 0
      %p144 = por %p142, %p143
      %p145 = scmp.ne.s32.totalorder %s137, %s139
      %p146 = scmp.eq.s32.totalorder %s18, 1
      %p147 = por %p145, %p146
      %p148 = scmp.ne.s32.totalorder %s139, %s140
      %p149 = scmp.eq.s32.totalorder %s18, 0
      %p150 = por %p148, %p149
      %p151 = scmp.ne.s32.totalorder %s139, %s140
      %p152 = scmp.eq.s32.totalorder %s19, 1
      %p153 = por %p151, %p152
      %p155 = scmp.ne.s32.totalorder %s140, %s154
      %p156 = scmp.eq.s32.totalorder %s19, 0
      %p157 = por %p155, %p156
      %s158 = ssub.s32 %s20, %s32
      %p159 = scmp.eq.s32.totalorder %s158, 0
      %s161 = sadd.s32 %s160, 1
      %s162 = scalar_select %p159, %s160, %s161
      %p165 = pneg %p159
      %p166 = scmp.eq.s32.totalorder %s13, 1
      %p167 = por %p165, %p166
      %p168 = scmp.ne.s32.totalorder %s160, %s163
      %p169 = scmp.eq.s32.totalorder %s13, 0
      %p170 = por %p168, %p169
      %p171 = scmp.ne.s32.totalorder %s160, %s163
      %p172 = scmp.eq.s32.totalorder %s18, 1
      %p173 = por %p171, %p172
      %p174 = scmp.ne.s32.totalorder %s163, %s164
      %p175 = scmp.eq.s32.totalorder %s18, 0
      %p176 = por %p174, %p175
      %p177 = scmp.ne.s32.totalorder %s163, %s164
      %p178 = scmp.eq.s32.totalorder %s19, 1
      %p179 = por %p177, %p178
      %p181 = scmp.ne.s32.totalorder %s164, %s180
      %p182 = scmp.eq.s32.totalorder %s19, 0
      %p183 = por %p181, %p182
      %p184 = scmp.le.s32.totalorder 1, %s13
      %p185 = scmp.lt.s32.totalorder %s13, 3
      %p186 = pnand %p184, %p185
      %p187 = pneg %p186
      // Predicated region
      $region9: #{_mlp_forward_impl.1} parent=5 // pred_check
        _
      $region10: #{_mlp_forward_impl.1} parent=5 // pred_check_branch
        %189 = sbr.rel (%p186) target = $region12
      $region11: #{_mlp_forward_impl.1} parent=5 // pred_region
        %s190 = ssub.s32 %s13, 1
        // Predicated region
        $region13: #{_mlp_forward_impl.1} parent=11 // pred_check
          %p191 = pneg %p77
        $region14: #{_mlp_forward_impl.1} parent=11 // pred_check_branch
          %193 = sbr.rel (%p191) target = $region16
        $region15: #{_mlp_forward_impl.1} parent=11 // pred_region
          %195 = vsyncadd [#allocation3], 0
          %s196 = smul.addr %s23, 16
          %s197 = smul.addr %s196, 8
          %s198 = scalar_lea.hbm %s1, %s197
          %s199 = sshll.u32 %s198, 4
          %s200 = int_to_ptr.hbm [resolvable:$true] %s199
          %s201 = sshll.u32 [#allocation2], 4
          %s202 = int_to_ptr.vmem [resolvable:$true] %s201
          %207 = dma.hbm_to_vmem [thread:$0]  %s200, 2048, %s202, [#allocation3], 128, 128, 8
        $region16: #{_mlp_forward_impl.1} parent=11 // pred_fallthru
          _
        // Predicated region
        $region17: #{_mlp_forward_impl.1} parent=11 // pred_check
          %p208 = pneg %p103
        $region18: #{_mlp_forward_impl.1} parent=11 // pred_check_branch
          %210 = sbr.rel (%p208) target = $region20
        $region19: #{_mlp_forward_impl.1} parent=11 // pred_region
          %p211 = scmp.lt.s32.totalorder %s23, 0
          %s212 = scalar_select %p211, %s23, 0
          %s213 = scalar_lea.vmem %s2, %s212
        $region20: #{_mlp_forward_impl.1} parent=11 // pred_fallthru
          _
        // Predicated region
        $region21: #{_mlp_forward_impl.1} parent=11 // pred_check
          %p214 = pneg %p129
        $region22: #{_mlp_forward_impl.1} parent=11 // pred_check_branch
          %216 = sbr.rel (%p214) target = $region24
        $region23: #{_mlp_forward_impl.1} parent=11 // pred_region
          %s217 = smul.u32 16, %s23
          %219 = vsyncadd [#allocation5], 0
          %s220 = smul.addr %s217, 8
          %s221 = scalar_lea.hbm %s3, %s220
          %s222 = sshll.u32 %s221, 4
          %s223 = int_to_ptr.hbm [resolvable:$true] %s222
          %s224 = sshll.u32 [#allocation4], 4
          %s225 = int_to_ptr.vmem [resolvable:$true] %s224
          %230 = dma.hbm_to_vmem [thread:$0]  %s223, 2048, %s225, [#allocation5], 128, 128, 8
        $region24: #{_mlp_forward_impl.1} parent=11 // pred_fallthru
          _
        // Predicated region
        $region25: #{_mlp_forward_impl.1} parent=11 // pred_check
          %p231 = pneg %p150
        $region26: #{_mlp_forward_impl.1} parent=11 // pred_check_branch
          %233 = sbr.rel (%p231) target = $region28
        $region27: #{_mlp_forward_impl.1} parent=11 // pred_region
          _
        $region28: #{_mlp_forward_impl.1} parent=11 // pred_fallthru
          _
      $region12: #{_mlp_forward_impl.1} parent=5 // pred_fallthru
        _
      %p234 = scmp.lt.s32.totalorder %s13, 2
      // Predicated region
      $region29: #{_mlp_forward_impl.1} parent=5 // pred_check
        %p235 = pneg %p234
      $region30: #{_mlp_forward_impl.1} parent=5 // pred_check_branch
        %237 = sbr.rel (%p235) target = $region32
      $region31: #{_mlp_forward_impl.1} parent=5 // pred_region
        // Predicated region
        $region33: #{_mlp_forward_impl.1} parent=31 // pred_check
          %p238 = pneg %p45
        $region34: #{_mlp_forward_impl.1} parent=31 // pred_check_branch
          %240 = sbr.rel (%p238) target = $region36
        $region35: #{_mlp_forward_impl.1} parent=31 // pred_region
          %p241 = scmp.lt.s32.totalorder %s20, 1
          %s242 = scalar_select %p241, %s20, 1
          %s243 = smul.addr %s242, 8
          %s244 = scalar_lea.vmem %s0, %s243
        $region36: #{_mlp_forward_impl.1} parent=31 // pred_fallthru
          _
      $region32: #{_mlp_forward_impl.1} parent=5 // pred_fallthru
        _
      %p245 = scmp.le.s32.totalorder 1, %s13
      %p246 = scmp.lt.s32.totalorder %s13, 3
      %p247 = pnand %p245, %p246
      %p248 = pneg %p247
      // Predicated region
      $region37: #{_mlp_forward_impl.1} parent=5 // pred_check
        _
      $region38: #{_mlp_forward_impl.1} parent=5 // pred_check_branch
        %250 = sbr.rel (%p247) target = $region40
      $region39: #{_mlp_forward_impl.1} parent=5 // pred_region
        %s251 = ssub.s32 %s13, 1
        // Predicated region
        $region41: #{_mlp_forward_impl.1} parent=39 // pred_check
          %p252 = pneg %p77
        $region42: #{_mlp_forward_impl.1} parent=39 // pred_check_branch
          %254 = sbr.rel (%p252) target = $region44
        $region43: #{_mlp_forward_impl.1} parent=39 // pred_region
          %256 = dma.done [#allocation3], 2048
        $region44: #{_mlp_forward_impl.1} parent=39 // pred_fallthru
          _
        // Predicated region
        $region45: #{_mlp_forward_impl.1} parent=39 // pred_check
          %p257 = pneg %p129
        $region46: #{_mlp_forward_impl.1} parent=39 // pred_check_branch
          %259 = sbr.rel (%p257) target = $region48
        $region47: #{_mlp_forward_impl.1} parent=39 // pred_region
          %261 = dma.done [#allocation5], 2048
        $region48: #{_mlp_forward_impl.1} parent=39 // pred_fallthru
          _
        %p262 = scmp.lt.s32.totalorder %s22, 1
        %s263 = scalar_select %p262, %s22, 1
        %s264 = smul.addr %s263, 8
        %s265 = scalar_lea.vmem %s0, %s264
        %p266 = pneg %p51
        %p267 = pneg %p48
        %p268 = pneg %p77
        %p269 = pneg %p74
        %p270 = scmp.lt.s32.totalorder %s23, 0
        %s271 = scalar_select %p270, %s23, 0
        %s272 = scalar_lea.vmem %s2, %s271
        %p273 = pneg %p103
        %p274 = pneg %p100
        %p275 = pneg %p129
        %p276 = pneg %p126
        %p277 = pneg %p150
        %p278 = pneg %p147
        %p279 = pneg %p176
        %p280 = pneg %p173
        %p281 = scmp.lt.s32.totalorder %s22, 1
        %s282 = scalar_select %p281, %s22, 1
        %s283 = smul.addr %s282, 8
        %s284 = scalar_lea.vmem %s5, %s283
        %p285 = scmp.lt.s32.totalorder %s22, 1
        %s286 = scalar_select %p285, %s22, 1
        %s287 = smul.addr %s286, 8
        %s288 = scalar_lea.vmem %s0, %s287
        %p289 = scmp.lt.s32.totalorder %s23, 0
        %s290 = scalar_select %p289, %s23, 0
        %s291 = scalar_lea.vmem %s2, %s290
        %s292 = smul.u32 16, %s23
        %p293 = scmp.lt.s32.totalorder %s22, 1
        %s294 = scalar_select %p293, %s22, 1
        %s295 = smul.addr %s294, 8
        %s296 = scalar_lea.vmem %s5, %s295
        %p297 = scmp.eq.s32.totalorder %s23, 0
        // Predicated region
        $region49: #{_mlp_forward_impl.1} parent=39 // pred_check
          %p298 = pneg %p297
        $region50: #{_mlp_forward_impl.1} parent=39 // pred_check_branch
          %300 = sbr.rel (%p298) target = $region52
        $region51: #{_mlp_forward_impl.1} parent=39 // pred_region
          %v301 = vld [vmem:[%s4] sm:$0x1]
          %v303 = vperm.slane %v301, 0
          %305 = vst [vmem:[%s296] sm:$0xff] %v303
        $region52: #{_mlp_forward_impl.1} parent=39 // pred_fallthru
          _
        %v306 = vld [vmem:[%s288] sm:$0xff]
        %v307 = vld [vmem:[#allocation2] sm:$0xff]
        %v308 = vld [vmem:[#allocation2 + $0x8] sm:$0xff]
        %v309 = vld [vmem:[#allocation2 + $0x10] sm:$0xff]
        %v310 = vld [vmem:[#allocation2 + $0x18] sm:$0xff]
        %v311 = vld [vmem:[#allocation2 + $0x20] sm:$0xff]
        %v312 = vld [vmem:[#allocation2 + $0x28] sm:$0xff]
        %v313 = vld [vmem:[#allocation2 + $0x30] sm:$0xff]
        %v314 = vld [vmem:[#allocation2 + $0x38] sm:$0xff]
        %v315 = vld [vmem:[#allocation2 + $0x40] sm:$0xff]
        %v316 = vld [vmem:[#allocation2 + $0x48] sm:$0xff]
        %v317 = vld [vmem:[#allocation2 + $0x50] sm:$0xff]
        %v318 = vld [vmem:[#allocation2 + $0x58] sm:$0xff]
        %v319 = vld [vmem:[#allocation2 + $0x60] sm:$0xff]
        %v320 = vld [vmem:[#allocation2 + $0x68] sm:$0xff]
        %v321 = vld [vmem:[#allocation2 + $0x70] sm:$0xff]
        %v322 = vld [vmem:[#allocation2 + $0x78] sm:$0xff]
        %v323 = vld [vmem:[%s291] sm:$0x1]
        %v325 = vperm.slane %v323, 0
        %327 = vmatpush.msra.mxu0 %v322
        %328 = vmatpush.msra.mxu0 %v321
        %329 = vmatpush.msra.mxu0 %v320
        %330 = vmatpush.msra.mxu0 %v319
        %331 = vmatpush.msra.mxu0 %v318
        %332 = vmatpush.msra.mxu0 %v317
        %333 = vmatpush.msra.mxu0 %v316
        %334 = vmatpush.msra.mxu0 %v315
        %335 = vmatpush.msra.mxu0 %v314
        %336 = vmatpush.msra.mxu0 %v313
        %337 = vmatpush.msra.mxu0 %v312
        %338 = vmatpush.msra.mxu0 %v311
        %339 = vmatpush.msra.mxu0 %v310
        %340 = vmatpush.msra.mxu0 %v309
        %341 = vmatpush.msra.mxu0 %v308
        %342 = vmatpush.msra.mxu0 %v307
        %343 = vmatmul.f32.gmra.mxu0 %v306
        %v344 = vpop.f32.mrf.mxu0
        %v345 = vadd.f32 %v325, %v344
        %346 = vdwg.mxu0
        %v347 = vmul.f32 %v345, %v345
        %v348 = vmul.f32 %v347, 0.035677407
        %v349 = vadd.f32 %v348, 0.7978846
        %v350 = vmul.f32 %v345, %v349
        %v351 = vmul.f32 %v345, 0.5
        %v352 = vtanh.pop %v350
        %v353 = vadd.f32 %v352, 1.0
        %v354 = vmul.f32 %v351, %v353
        %v355 = vld [vmem:[%s296] sm:$0xff]
        %v356 = vld [vmem:[#allocation4] sm:$0xff]
        %v357 = vld [vmem:[#allocation4 + $0x8] sm:$0xff]
        %v358 = vld [vmem:[#allocation4 + $0x10] sm:$0xff]
        %v359 = vld [vmem:[#allocation4 + $0x18] sm:$0xff]
        %v360 = vld [vmem:[#allocation4 + $0x20] sm:$0xff]
        %v361 = vld [vmem:[#allocation4 + $0x28] sm:$0xff]
        %v362 = vld [vmem:[#allocation4 + $0x30] sm:$0xff]
        %v363 = vld [vmem:[#allocation4 + $0x38] sm:$0xff]
        %v364 = vld [vmem:[#allocation4 + $0x40] sm:$0xff]
        %v365 = vld [vmem:[#allocation4 + $0x48] sm:$0xff]
        %v366 = vld [vmem:[#allocation4 + $0x50] sm:$0xff]
        %v367 = vld [vmem:[#allocation4 + $0x58] sm:$0xff]
        %v368 = vld [vmem:[#allocation4 + $0x60] sm:$0xff]
        %v369 = vld [vmem:[#allocation4 + $0x68] sm:$0xff]
        %v370 = vld [vmem:[#allocation4 + $0x70] sm:$0xff]
        %v371 = vld [vmem:[#allocation4 + $0x78] sm:$0xff]
        %372 = vmatpush.msra.mxu0 %v371
        %373 = vmatpush.msra.mxu0 %v370
        %374 = vmatpush.msra.mxu0 %v369
        %375 = vmatpush.msra.mxu0 %v368
        %376 = vmatpush.msra.mxu0 %v367
        %377 = vmatpush.msra.mxu0 %v366
        %378 = vmatpush.msra.mxu0 %v365
        %379 = vmatpush.msra.mxu0 %v364
        %380 = vmatpush.msra.mxu0 %v363
        %381 = vmatpush.msra.mxu0 %v362
        %382 = vmatpush.msra.mxu0 %v361
        %383 = vmatpush.msra.mxu0 %v360
        %384 = vmatpush.msra.mxu0 %v359
        %385 = vmatpush.msra.mxu0 %v358
        %386 = vmatpush.msra.mxu0 %v357
        %387 = vmatpush.msra.mxu0 %v356
        %388 = vmatmul.f32.gmra.mxu0 %v354
        %v389 = vpop.f32.mrf.mxu0
        %v390 = vadd.f32 0.0, %v389
        %391 = vdwg.mxu0
        %v392 = vadd.f32 %v355, %v390
        %393 = vst [vmem:[%s296] sm:$0xff] %v392
        %p394 = scmp.lt.s32.totalorder %s22, 1
        %s395 = scalar_select %p394, %s22, 1
        %s396 = smul.addr %s395, 8
        %s397 = scalar_lea.vmem %s5, %s396
        // Predicated region
        $region53: #{_mlp_forward_impl.1} parent=39 // pred_check
          %p398 = pneg %p173
        $region54: #{_mlp_forward_impl.1} parent=39 // pred_check_branch
          %400 = sbr.rel (%p398) target = $region56
        $region55: #{_mlp_forward_impl.1} parent=39 // pred_region
          _
        $region56: #{_mlp_forward_impl.1} parent=39 // pred_fallthru
          _
      $region40: #{_mlp_forward_impl.1} parent=5 // pred_fallthru
        _
      %p401 = scmp.le.s32.totalorder 2, %s13
      // Predicated region
      $region57: #{_mlp_forward_impl.1} parent=5 // pred_check
        %p402 = pneg %p401
      $region58: #{_mlp_forward_impl.1} parent=5 // pred_check_branch
        %404 = sbr.rel (%p402) target = $region60
      $region59: #{_mlp_forward_impl.1} parent=5 // pred_region
        %s405 = ssub.s32 %s13, 2
        // Predicated region
        $region61: #{_mlp_forward_impl.1} parent=59 // pred_check
          %p406 = pneg %p179
        $region62: #{_mlp_forward_impl.1} parent=59 // pred_check_branch
          %408 = sbr.rel (%p406) target = $region64
        $region63: #{_mlp_forward_impl.1} parent=59 // pred_region
          %p409 = scmp.lt.s32.totalorder %s24, 1
          %s410 = scalar_select %p409, %s24, 1
          %s411 = smul.addr %s410, 8
          %s412 = scalar_lea.vmem %s5, %s411
        $region64: #{_mlp_forward_impl.1} parent=59 // pred_fallthru
          _
      $region60: #{_mlp_forward_impl.1} parent=5 // pred_fallthru
        _
    $region6: #{_mlp_forward_impl.1} parent=1 // loop_footer
      %s17 = sadd.s32 1, %s13
    $region7: #{_mlp_forward_impl.1} parent=1 // loop_footer_branch
      %12 = sbr.rel target = $region3
    $region8: #{_mlp_forward_impl.1} parent=1 // loop_exit
      _
    %413 = vsyncpa [#allocation3], 1
    %s414 = scalar_lea.sflag [#allocation3], 1
    %415 = vsyncpa %s414, 1
    %416 = vsyncpa [#allocation5], 1

</llo_original>
